<compile_context>
chip_gen: v6e
topology: v6e:2x2x1
jax: 0.10.0
libtpu: 0.0.40
codegen_flags: <defaults>
</compile_context>

<pallas_src>
import math

import jax
import jax.numpy as jnp
from jax.experimental import pallas as pl
from jax.experimental.pallas import tpu as pltpu

FEATURE_DIM = 768     # vit-base-patch32-384 hidden_size
NUM_CLASS = 3         # "3_class" training script
BN_EPS = 1e-5

H1 = 256
H2 = 128
H3 = 64
H3P = 128             # H3 zero-padded to a full 128-lane vreg / MXU feed
OUT_PAD = 128         # lane-dense padded logits width (>= NUM_CLASS)
BIAS_PACK_W = 256     # lane width of the packed bias buffer (>= max(H1, OUT_PAD))


# -----------------------------------------------------------------------------
# Kernel: fused (folded-BN) MLP head.  All matmuls on the MXU in bf16 with f32
# accumulation; bias add + ReLU epilogues in f32; bf16 lane-dense writeback.
# -----------------------------------------------------------------------------
def mlp_head_kernel(x_ref, w1_ref, w2_ref, w3_ref, w4_ref, bias_ref, out_ref):
    x = x_ref[...].astype(jnp.bfloat16)          # no-op if x already bf16
    bp = bias_ref[...]                           # [4, 256] f32 packed, BN-folded biases

    h = jnp.dot(x, w1_ref[...], preferred_element_type=jnp.float32)
    h = jnp.maximum(h + bp[0:1, :H1], 0.0)

    h = jnp.dot(h.astype(jnp.bfloat16), w2_ref[...],
                preferred_element_type=jnp.float32)
    h = jnp.maximum(h + bp[1:2, :H2], 0.0)

    h = jnp.dot(h.astype(jnp.bfloat16), w3_ref[...],
                preferred_element_type=jnp.float32)
    h = jnp.maximum(h + bp[2:3, :H3P], 0.0)

    logits = jnp.dot(h.astype(jnp.bfloat16), w4_ref[...],
                     preferred_element_type=jnp.float32)
    out_ref[...] = (logits + bp[3:4, :OUT_PAD]).astype(out_ref.dtype)


def _pick_batch_tile(B, batch_tile):
    """Multiple of 256, <= batch_tile, and strictly < B whenever B > 256 so the
    grid has >= 2 steps (v7x megacore).  Tiny batches run as a single tile."""
    if B <= 256:
        return B
    tb = min(batch_tile, B - 1)
    tb -= tb % 256
    return max(tb, 256)


def multimodel_head(x, prep, *, batch_tile=1024):
    """x: [B, FEATURE_DIM] (f32 or bf16) CLS features. Returns logits [B, NUM_CLASS] f32."""
    B = x.shape[0]
    tb = _pick_batch_tile(B, batch_tile)
    grid = (pl.cdiv(B, tb),)                     # ragged last tile handled by Pallas masking

    const = lambda i: (0, 0)                     # constant block index -> VMEM resident
    resident = dict(pipeline_mode=pl.Buffered(1))  # single-buffer the constant blocks
    in_specs = [
        pl.BlockSpec((tb, FEATURE_DIM), lambda i: (i, 0)),   # x streams over batch
        pl.BlockSpec((FEATURE_DIM, H1), const, **resident),
        pl.BlockSpec((H1, H2), const, **resident),
        pl.BlockSpec((H2, H3P), const, **resident),
        pl.BlockSpec((H3P, OUT_PAD), const, **resident),
        pl.BlockSpec((4, BIAS_PACK_W), const, **resident),
    ]
    out_specs = pl.BlockSpec((tb, OUT_PAD), lambda i: (i, 0))

    w_elems = FEATURE_DIM * H1 + H1 * H2 + H2 * H3P + H3P * OUT_PAD
    w_bytes = 2 * w_elems                                    # bf16 weights
    bias_bytes = 4 * BIAS_PACK_W * 4

    # Explicit scoped-VMEM limit derived from the actual tile footprint
    # (x double-buffered, bf16 out double-buffered, single-buffered weights),
    # so raising batch_tile never trips v5e's 16 MiB default; capped well under
    # v7x's 64 MiB physical VMEM.
    vmem_need = (2 * tb * FEATURE_DIM * x.dtype.itemsize
                 + 2 * tb * OUT_PAD * 2
                 + w_bytes + bias_bytes)
    vmem_limit = int(min(56 << 20, max(16 << 20, round(1.5 * vmem_need))))

    cost = pl.CostEstimate(
        flops=2 * B * w_elems,
        transcendentals=0,
        bytes_accessed=(w_bytes + bias_bytes
                        + B * FEATURE_DIM * x.dtype.itemsize   # x
                        + B * OUT_PAD * 2),                    # bf16 padded logits
    )

    out = pl.pallas_call(
        mlp_head_kernel,
        out_shape=jax.ShapeDtypeStruct((B, OUT_PAD), jnp.bfloat16),
        grid=grid,
        in_specs=in_specs,
        out_specs=out_specs,
        compiler_params=pltpu.CompilerParams(
            dimension_semantics=("parallel",),
            vmem_limit_bytes=vmem_limit),
        cost_estimate=cost,
    )(x, prep["w1"], prep["w2"], prep["w3"], prep["w4"], prep["bias"])

    # Padded logit columns are exact zeros; slice before any softmax/CE use.
    return out[:, :NUM_CLASS].astype(jnp.float32)


# -----------------------------------------------------------------------------
# Parameter handling.
# -----------------------------------------------------------------------------
def _linear_init(key, fan_in, fan_out):
    # PyTorch nn.Linear default: U(-1/sqrt(fan_in), 1/sqrt(fan_in)).
    kw, kb = jax.random.split(key)
    bound = 1.0 / math.sqrt(fan_in)
    w = jax.random.uniform(kw, (fan_in, fan_out), jnp.float32, -bound, bound)
    b = jax.random.uniform(kb, (fan_out,), jnp.float32, -bound, bound)
    return w, b


def init_params(key):
    """Raw (PyTorch-equivalent) parameters: w/b per linear, bn rows per BatchNorm."""
    dims = [FEATURE_DIM, H1, H2, H3, NUM_CLASS]
    keys = jax.random.split(key, 4)
    params = {}
    for i in range(4):
        w, b = _linear_init(keys[i], dims[i], dims[i + 1])
        params[f"w{i + 1}"] = w
        params[f"b{i + 1}"] = b
    # BatchNorm1d defaults: gamma=1, beta=0, running_mean=0, running_var=1.
    for i, d in enumerate([H1, H2, H3], start=1):
        params[f"bn{i}"] = jnp.stack([
            jnp.ones((d,), jnp.float32),    # gamma
            jnp.zeros((d,), jnp.float32),   # beta
            jnp.zeros((d,), jnp.float32),   # running_mean
            jnp.ones((d,), jnp.float32),    # running_var
        ], axis=0)
    return params


def prepare_params(raw):
    """Fold eval-mode BNs into linears, zero-pad H3->128 and the logits to a
    128-lane width, pack biases into one (4,256) buffer, cast weights to bf16."""
    prep = {}
    bias_rows = []
    out_widths = {1: H1, 2: H2, 3: H3P}
    for i in range(1, 4):
        w, b = raw[f"w{i}"], raw[f"b{i}"]
        gamma, beta, mean, var = raw[f"bn{i}"]
        s = gamma * jax.lax.rsqrt(var + BN_EPS)
        w_f = w * s[None, :]
        b_f = (b - mean) * s + beta
        pad_to = out_widths[i]
        w_f = jnp.pad(w_f, ((0, 0), (0, pad_to - w_f.shape[1])))
        b_f = jnp.pad(b_f, (0, pad_to - b_f.shape[0]))
        prep[f"w{i}"] = w_f.astype(jnp.bfloat16)
        bias_rows.append(jnp.pad(b_f, (0, BIAS_PACK_W - b_f.shape[0])))
    # Layer 4: pad input dim 64->128 (zero rows match the padded h3 lanes) and
    # output dim 3->128 (lane-dense writeback).
    w4 = jnp.pad(raw["w4"], ((0, H3P - H3), (0, OUT_PAD - NUM_CLASS)))
    b4 = jnp.pad(raw["b4"], (0, OUT_PAD - NUM_CLASS))
    prep["w4"] = w4.astype(jnp.bfloat16)
    bias_rows.append(jnp.pad(b4, (0, BIAS_PACK_W - OUT_PAD)))
    prep["bias"] = jnp.stack(bias_rows, axis=0).astype(jnp.float32)   # (4, 256)
    return prep


def cross_entropy(logits, labels):
    # Glue: matches nn.CrossEntropyLoss (mean reduction) for the `labels` path.
    logz = jax.nn.logsumexp(logits, axis=-1)
    picked = jnp.take_along_axis(logits, labels[:, None], axis=-1)[:, 0]
    return jnp.mean(logz - picked)


def reference_head(x, raw):
    """Pure-f32 reference matching the original PyTorch eval semantics."""
    h = x
    for i in range(1, 4):
        h = h @ raw[f"w{i}"] + raw[f"b{i}"]
        gamma, beta, mean, var = raw[f"bn{i}"]
        h = (h - mean) / jnp.sqrt(var + BN_EPS) * gamma + beta
        h = jnp.maximum(h, 0.0)
    return h @ raw["w4"] + raw["b4"]


if __name__ == "__main__":
    key = jax.random.PRNGKey(0)
    k_param, k_feat, k_lab = jax.random.split(key, 3)

    raw_params = init_params(k_param)
    prep_params = prepare_params(raw_params)

    B = 8
    # Backbone CLS-token features (stand-in for the ViT output).
    x = jax.random.normal(k_feat, (B, FEATURE_DIM), jnp.float32)
    labels = jax.random.randint(k_lab, (B,), 0, NUM_CLASS)

    logits = jax.block_until_ready(multimodel_head(x, prep_params))

    # Optional `labels is not None` path (plain-JAX glue).
    loss = jax.block_until_ready(cross_entropy(logits, labels))

    # Correctness check against a pure-f32 reference of the same head.
    # Weights/activations/stored logits are bf16, so tolerance reflects bf16
    # quantization (observed error is ~1e-3 on these magnitudes).
    ref = reference_head(x, raw_params)
    max_err = float(jnp.max(jnp.abs(logits - ref)))
    assert logits.shape == (B, NUM_CLASS)
    assert jnp.allclose(logits, ref, atol=5e-2, rtol=5e-2), f"mismatch vs reference (max err {max_err})"
    assert jnp.isfinite(loss)

    print("KERNEL_OK")
</pallas_src>

<mosaic_0001>
module attributes {stable_mosaic.version = 11 : i64} {
  func.func @mlp_head_kernel(%arg0: i32, %arg1: memref<8x768xf32, #tpu.memory_space<vmem>>, %arg2: memref<768x256xbf16, #tpu.memory_space<vmem>>, %arg3: memref<256x128xbf16, #tpu.memory_space<vmem>>, %arg4: memref<128x128xbf16, #tpu.memory_space<vmem>>, %arg5: memref<128x128xbf16, #tpu.memory_space<vmem>>, %arg6: memref<4x256xf32, #tpu.memory_space<vmem>>, %arg7: memref<8x128xbf16, #tpu.memory_space<vmem>>) attributes {dimension_semantics = [#tpu.dimension_semantics<parallel>], iteration_bounds = array<i64: 1>, scalar_prefetch = 0 : i64, scratch_operands = 0 : i64, tpu.core_type = #tpu.core_type<tc>, window_params = [{transform_indices = @transform_0, window_bounds = array<i64: 8, 768>}, {pipeline_mode = #tpu.pipeline_mode<synchronous>, transform_indices = @transform_1, window_bounds = array<i64: 768, 256>}, {pipeline_mode = #tpu.pipeline_mode<synchronous>, transform_indices = @transform_2, window_bounds = array<i64: 256, 128>}, {pipeline_mode = #tpu.pipeline_mode<synchronous>, transform_indices = @transform_3, window_bounds = array<i64: 128, 128>}, {pipeline_mode = #tpu.pipeline_mode<synchronous>, transform_indices = @transform_4, window_bounds = array<i64: 128, 128>}, {pipeline_mode = #tpu.pipeline_mode<synchronous>, transform_indices = @transform_5, window_bounds = array<i64: 4, 256>}, {transform_indices = @transform_6, window_bounds = array<i64: 8, 128>}]} {
    %c0 = arith.constant 0 : index
    %c0_0 = arith.constant 0 : index
    %0 = vector.load %arg1[%c0, %c0_0] : memref<8x768xf32, #tpu.memory_space<vmem>>, vector<8x768xf32>
    %1 = arith.truncf %0 : vector<8x768xf32> to vector<8x768xbf16>
    %c0_1 = arith.constant 0 : index
    %c0_2 = arith.constant 0 : index
    %2 = vector.load %arg6[%c0_1, %c0_2] : memref<4x256xf32, #tpu.memory_space<vmem>>, vector<4x256xf32>
    %c0_3 = arith.constant 0 : index
    %c0_4 = arith.constant 0 : index
    %3 = vector.load %arg2[%c0_3, %c0_4] : memref<768x256xbf16, #tpu.memory_space<vmem>>, vector<768x256xbf16>
    %cst = arith.constant dense<0.000000e+00> : vector<8x256xf32>
    %4 = tpu.matmul %1, %3, %cst {dimension_numbers = #tpu.dot_dimension_numbers<[1], [0], [0], [1], [0, 0, 1, 1], [], []>} : vector<8x768xbf16>, vector<768x256xbf16>, vector<8x256xf32> -> vector<8x256xf32>
    %5 = vector.extract_strided_slice %2 {offsets = [0, 0], sizes = [1, 256], strides = [1, 1]} : vector<4x256xf32> to vector<1x256xf32>
    %6 = vector.broadcast %5 : vector<1x256xf32> to vector<8x256xf32>
    %7 = arith.addf %4, %6 : vector<8x256xf32>
    %cst_5 = arith.constant 0.000000e+00 : f32
    %8 = vector.broadcast %cst_5 : f32 to vector<8x256xf32>
    %9 = arith.maximumf %7, %8 : vector<8x256xf32>
    %10 = arith.truncf %9 : vector<8x256xf32> to vector<8x256xbf16>
    %c0_6 = arith.constant 0 : index
    %c0_7 = arith.constant 0 : index
    %11 = vector.load %arg3[%c0_6, %c0_7] : memref<256x128xbf16, #tpu.memory_space<vmem>>, vector<256x128xbf16>
    %cst_8 = arith.constant dense<0.000000e+00> : vector<8x128xf32>
    %12 = tpu.matmul %10, %11, %cst_8 {dimension_numbers = #tpu.dot_dimension_numbers<[1], [0], [0], [1], [0, 0, 1, 1], [], []>} : vector<8x256xbf16>, vector<256x128xbf16>, vector<8x128xf32> -> vector<8x128xf32>
    %13 = vector.extract_strided_slice %2 {offsets = [1, 0], sizes = [1, 128], strides = [1, 1]} : vector<4x256xf32> to vector<1x128xf32>
    %14 = vector.broadcast %13 : vector<1x128xf32> to vector<8x128xf32>
    %15 = arith.addf %12, %14 : vector<8x128xf32>
    %cst_9 = arith.constant 0.000000e+00 : f32
    %16 = vector.broadcast %cst_9 : f32 to vector<8x128xf32>
    %17 = arith.maximumf %15, %16 : vector<8x128xf32>
    %18 = arith.truncf %17 : vector<8x128xf32> to vector<8x128xbf16>
    %c0_10 = arith.constant 0 : index
    %c0_11 = arith.constant 0 : index
    %19 = vector.load %arg4[%c0_10, %c0_11] : memref<128x128xbf16, #tpu.memory_space<vmem>>, vector<128x128xbf16>
    %cst_12 = arith.constant dense<0.000000e+00> : vector<8x128xf32>
    %20 = tpu.matmul %18, %19, %cst_12 {dimension_numbers = #tpu.dot_dimension_numbers<[1], [0], [0], [1], [0, 0, 1, 1], [], []>} : vector<8x128xbf16>, vector<128x128xbf16>, vector<8x128xf32> -> vector<8x128xf32>
    %21 = vector.extract_strided_slice %2 {offsets = [2, 0], sizes = [1, 128], strides = [1, 1]} : vector<4x256xf32> to vector<1x128xf32>
    %22 = vector.broadcast %21 : vector<1x128xf32> to vector<8x128xf32>
    %23 = arith.addf %20, %22 : vector<8x128xf32>
    %cst_13 = arith.constant 0.000000e+00 : f32
    %24 = vector.broadcast %cst_13 : f32 to vector<8x128xf32>
    %25 = arith.maximumf %23, %24 : vector<8x128xf32>
    %26 = arith.truncf %25 : vector<8x128xf32> to vector<8x128xbf16>
    %c0_14 = arith.constant 0 : index
    %c0_15 = arith.constant 0 : index
    %27 = vector.load %arg5[%c0_14, %c0_15] : memref<128x128xbf16, #tpu.memory_space<vmem>>, vector<128x128xbf16>
    %cst_16 = arith.constant dense<0.000000e+00> : vector<8x128xf32>
    %28 = tpu.matmul %26, %27, %cst_16 {dimension_numbers = #tpu.dot_dimension_numbers<[1], [0], [0], [1], [0, 0, 1, 1], [], []>} : vector<8x128xbf16>, vector<128x128xbf16>, vector<8x128xf32> -> vector<8x128xf32>
    %29 = vector.extract_strided_slice %2 {offsets = [3, 0], sizes = [1, 128], strides = [1, 1]} : vector<4x256xf32> to vector<1x128xf32>
    %30 = vector.broadcast %29 : vector<1x128xf32> to vector<8x128xf32>
    %31 = arith.addf %28, %30 : vector<8x128xf32>
    %32 = arith.truncf %31 : vector<8x128xf32> to vector<8x128xbf16>
    %c0_17 = arith.constant 0 : index
    %c0_18 = arith.constant 0 : index
    %33 = vector.load %arg7[%c0_17, %c0_18] : memref<8x128xbf16, #tpu.memory_space<vmem>>, vector<8x128xbf16>
    tpu.vector_store %arg7[%c0_17, %c0_18], %32 {strides = array<i32>} : memref<8x128xbf16, #tpu.memory_space<vmem>>, vector<8x128xbf16>,
    return
  }
  func.func @transform_0(%arg0: i32) -> (i32, i32) {
    %c0_i32 = arith.constant 0 : i32
    %c0_i32_0 = arith.constant 0 : i32
    return %arg0, %c0_i32 : i32, i32
  }
  func.func @transform_1(%arg0: i32) -> (i32, i32) {
    %c0_i32 = arith.constant 0 : i32
    %c0_i32_0 = arith.constant 0 : i32
    %c0_i32_1 = arith.constant 0 : i32
    return %c0_i32, %c0_i32_0 : i32, i32
  }
  func.func @transform_2(%arg0: i32) -> (i32, i32) {
    %c0_i32 = arith.constant 0 : i32
    %c0_i32_0 = arith.constant 0 : i32
    %c0_i32_1 = arith.constant 0 : i32
    return %c0_i32, %c0_i32_0 : i32, i32
  }
  func.func @transform_3(%arg0: i32) -> (i32, i32) {
    %c0_i32 = arith.constant 0 : i32
    %c0_i32_0 = arith.constant 0 : i32
    %c0_i32_1 = arith.constant 0 : i32
    return %c0_i32, %c0_i32_0 : i32, i32
  }
  func.func @transform_4(%arg0: i32) -> (i32, i32) {
    %c0_i32 = arith.constant 0 : i32
    %c0_i32_0 = arith.constant 0 : i32
    %c0_i32_1 = arith.constant 0 : i32
    return %c0_i32, %c0_i32_0 : i32, i32
  }
  func.func @transform_5(%arg0: i32) -> (i32, i32) {
    %c0_i32 = arith.constant 0 : i32
    %c0_i32_0 = arith.constant 0 : i32
    %c0_i32_1 = arith.constant 0 : i32
    return %c0_i32, %c0_i32_0 : i32, i32
  }
  func.func @transform_6(%arg0: i32) -> (i32, i32) {
    %c0_i32 = arith.constant 0 : i32
    %c0_i32_0 = arith.constant 0 : i32
    return %arg0, %c0_i32 : i32, i32
  }
}

</mosaic_0001>

<llo_original>
// kernel: tpu_custom_call.1
$region0: #{tpu_custom_call.1}
  #allocation0 [shape = 'u32[]', space=smem, size = 0x4, offset = 0x4, fixed_abs, tag = 'smem constant byte address 0x4 - core index']
  #allocation1 [shape = 'u32[144,128]{1,0:T(1,128)}', space=vmem, size = 0x12000, scoped, tag = 'internal scratch']
  %s0 = inlined_call_operand.hbm [shape: f32[8,768], index: 0, kind: input, shape index: {}]
  %s1 = inlined_call_operand.hbm [shape: bf16[768,256], index: 1, kind: input, shape index: {}]
  %s2 = inlined_call_operand.hbm [shape: bf16[256,128], index: 2, kind: input, shape index: {}]
  %s3 = inlined_call_operand.hbm [shape: bf16[128,128], index: 3, kind: input, shape index: {}]
  %s4 = inlined_call_operand.hbm [shape: bf16[128,128], index: 4, kind: input, shape index: {}]
  %s5 = inlined_call_operand.vmem [shape: f32[4,256], index: 5, kind: input, shape index: {}]
  %s6 = inlined_call_operand.hbm [shape: bf16[8,128], index: 6, kind: output, shape index: {}]
  %s7 = sld [smem:[#allocation0]]
  $region54: #{tpu_custom_call.1} parent=0
    _
  %s9 = ssub.s32 1, %s7
  %s10 = scalar_select 0, %s9, %s7
  $region1: #{tpu_custom_call.1} parent=0
    #allocation2 [shape = 'u8[24576]{0}', space=vmem, size = 0x6000, scoped, tag = 'input window, operand 0, single buffered']
    #allocation3 [shape = 's32[1]{0}', space=sflag, size = 0x4, scoped, tag = 'scoped memory for tpu_custom_call.1']
    #allocation4 [shape = 's32[1]{0}', space=sflag, size = 0x4, scoped, tag = 'scoped memory for tpu_custom_call.1']
    #allocation5 [shape = 'u8[393216]{0}', space=vmem, size = 0x60000, scoped, tag = 'input window, operand 1, single buffered']
    #allocation6 [shape = 's32[1]{0}', space=sflag, size = 0x4, scoped, tag = 'scoped memory for tpu_custom_call.1']
    #allocation7 [shape = 'u8[65536]{0}', space=vmem, size = 0x10000, scoped, tag = 'input window, operand 2, single buffered']
    #allocation8 [shape = 'u8[32768]{0}', space=vmem, size = 0x8000, scoped, tag = 'input window, operand 3, single buffered']
    #allocation9 [shape = 's32[1]{0}', space=sflag, size = 0x4, scoped, tag = 'scoped memory for tpu_custom_call.1']
    #allocation10 [shape = 'u8[32768]{0}', space=vmem, size = 0x8000, scoped, tag = 'input window, operand 4, single buffered']
    #allocation11 [shape = 'u8[2048]{0}', space=vmem, size = 0x800, scoped, tag = 'output window, operand 0, single buffered']
    %11 = vsyncpa [#allocation3], 0
    %12 = vsyncpa [#allocation6], 0
    %13 = vsyncpa [#allocation9], 0
    %14 = vsyncpa [#allocation4], 0
    // Predicated region
    $region2: #{tpu_custom_call.1} parent=1 // pred_check
      _
    $region3: #{tpu_custom_call.1} parent=1 // pred_check_branch
      %16 = sbr.rel (0) target = $region5
    $region4: #{tpu_custom_call.1} parent=1 // pred_region
      %s18 = ssub.s32 768, 768
      %19 = vsyncadd [#allocation3], %s18
      %s21 = sshll.u32 [#allocation2], 4
      %s22 = int_to_ptr.vmem [resolvable:$true] %s21
      %24 = dma.hbm_to_vmem [thread:$0]  %s0, 768, %s22, [#allocation3]
    $region5: #{tpu_custom_call.1} parent=1 // pred_fallthru
      _
    // Predicated region
    $region6: #{tpu_custom_call.1} parent=1 // pred_check
      _
    $region7: #{tpu_custom_call.1} parent=1 // pred_check_branch
      %26 = sbr.rel (0) target = $region9
    $region8: #{tpu_custom_call.1} parent=1 // pred_region
      %s28 = ssub.s32 12288, 12288
      %29 = vsyncadd [#allocation6], %s28
      %s30 = sshll.u32 [#allocation5], 4
      %s31 = int_to_ptr.vmem [resolvable:$true] %s30
      %36 = dma.hbm_to_vmem [thread:$0]  %s1, 12288, %s31, [#allocation6], 128, 128, 8
    $region9: #{tpu_custom_call.1} parent=1 // pred_fallthru
      _
    // Predicated region
    $region10: #{tpu_custom_call.1} parent=1 // pred_check
      _
    $region11: #{tpu_custom_call.1} parent=1 // pred_check_branch
      %38 = sbr.rel (0) target = $region13
    $region12: #{tpu_custom_call.1} parent=1 // pred_region
      %s40 = ssub.s32 2048, 2048
      %41 = vsyncadd [#allocation6], %s40
      %s42 = sshll.u32 [#allocation7], 4
      %s43 = int_to_ptr.vmem [resolvable:$true] %s42
      %48 = dma.hbm_to_vmem [thread:$0]  %s2, 2048, %s43, [#allocation6], 64, 64, 4
    $region13: #{tpu_custom_call.1} parent=1 // pred_fallthru
      _
    // Predicated region
    $region14: #{tpu_custom_call.1} parent=1 // pred_check
      _
    $region15: #{tpu_custom_call.1} parent=1 // pred_check_branch
      %50 = sbr.rel (0) target = $region17
    $region16: #{tpu_custom_call.1} parent=1 // pred_region
      %s52 = ssub.s32 1024, 1024
      %53 = vsyncadd [#allocation9], %s52
      %s54 = sshll.u32 [#allocation8], 4
      %s55 = int_to_ptr.vmem [resolvable:$true] %s54
      %60 = dma.hbm_to_vmem [thread:$0]  %s3, 1024, %s55, [#allocation9], 64, 64, 4
    $region17: #{tpu_custom_call.1} parent=1 // pred_fallthru
      _
    // Predicated region
    $region18: #{tpu_custom_call.1} parent=1 // pred_check
      _
    $region19: #{tpu_custom_call.1} parent=1 // pred_check_branch
      %62 = sbr.rel (0) target = $region21
    $region20: #{tpu_custom_call.1} parent=1 // pred_region
      %s64 = ssub.s32 1024, 1024
      %65 = vsyncadd [#allocation9], %s64
      %s66 = sshll.u32 [#allocation10], 4
      %s67 = int_to_ptr.vmem [resolvable:$true] %s66
      %72 = dma.hbm_to_vmem [thread:$0]  %s4, 1024, %s67, [#allocation9], 64, 64, 4
    $region21: #{tpu_custom_call.1} parent=1 // pred_fallthru
      _
    // Predicated region
    $region22: #{tpu_custom_call.1} parent=1 // pred_check
      _
    $region23: #{tpu_custom_call.1} parent=1 // pred_check_branch
      %74 = sbr.rel (0) target = $region25
    $region24: #{tpu_custom_call.1} parent=1 // pred_region
      _
    $region25: #{tpu_custom_call.1} parent=1 // pred_fallthru
      _
    // Predicated region
    $region26: #{tpu_custom_call.1} parent=1 // pred_check
      _
    $region27: #{tpu_custom_call.1} parent=1 // pred_check_branch
      %76 = sbr.rel (0) target = $region29
    $region28: #{tpu_custom_call.1} parent=1 // pred_region
      %77 = dma.done [#allocation3], 768
    $region29: #{tpu_custom_call.1} parent=1 // pred_fallthru
      _
    // Predicated region
    $region30: #{tpu_custom_call.1} parent=1 // pred_check
      _
    $region31: #{tpu_custom_call.1} parent=1 // pred_check_branch
      %79 = sbr.rel (0) target = $region33
    $region32: #{tpu_custom_call.1} parent=1 // pred_region
      %80 = dma.done [#allocation6], 12288
    $region33: #{tpu_custom_call.1} parent=1 // pred_fallthru
      _
    // Predicated region
    $region34: #{tpu_custom_call.1} parent=1 // pred_check
      _
    $region35: #{tpu_custom_call.1} parent=1 // pred_check_branch
      %82 = sbr.rel (0) target = $region37
    $region36: #{tpu_custom_call.1} parent=1 // pred_region
      %83 = dma.done [#allocation6], 2048
    $region37: #{tpu_custom_call.1} parent=1 // pred_fallthru
      _
    // Predicated region
    $region38: #{tpu_custom_call.1} parent=1 // pred_check
      _
    $region39: #{tpu_custom_call.1} parent=1 // pred_check_branch
      %85 = sbr.rel (0) target = $region41
    $region40: #{tpu_custom_call.1} parent=1 // pred_region
      %86 = dma.done [#allocation9], 1024
    $region41: #{tpu_custom_call.1} parent=1 // pred_fallthru
      _
    // Predicated region
    $region42: #{tpu_custom_call.1} parent=1 // pred_check
      _
    $region43: #{tpu_custom_call.1} parent=1 // pred_check_branch
      %88 = sbr.rel (0) target = $region45
    $region44: #{tpu_custom_call.1} parent=1 // pred_region
      %89 = dma.done [#allocation9], 1024
    $region45: #{tpu_custom_call.1} parent=1 // pred_fallthru
      _
    %v91 = vld [vmem:[#allocation2] sm:$0xff]
    %v92 = vld [vmem:[#allocation2 + $0x8] sm:$0xff]
    %v93 = vld [vmem:[#allocation2 + $0x10] sm:$0xff]
    %v94 = vld [vmem:[#allocation2 + $0x18] sm:$0xff]
    %v95 = vld [vmem:[#allocation2 + $0x20] sm:$0xff]
    %v96 = vld [vmem:[#allocation2 + $0x28] sm:$0xff]
    %v97 = vpack.c.bf16 %v91, %v91
    %v98 = vpack.c.bf16 %v92, %v92
    %v99 = vpack.c.bf16 %v93, %v93
    %v100 = vpack.c.bf16 %v94, %v94
    %v101 = vpack.c.bf16 %v95, %v95
    %v102 = vpack.c.bf16 %v96, %v96
    %v103 = vld [vmem:[%s5] sm:$0xff]
    %v104 = vld [vmem:[#allocation5] sm:$0xff]
    %v105 = vld [vmem:[#allocation5 + $0x8] sm:$0xff]
    %v106 = vld [vmem:[#allocation5 + $0x10] sm:$0xff]
    %v107 = vld [vmem:[#allocation5 + $0x18] sm:$0xff]
    %v108 = vld [vmem:[#allocation5 + $0x20] sm:$0xff]
    %v109 = vld [vmem:[#allocation5 + $0x28] sm:$0xff]
    %v110 = vld [vmem:[#allocation5 + $0x30] sm:$0xff]
    %v111 = vld [vmem:[#allocation5 + $0x38] sm:$0xff]
    %v112 = vld [vmem:[#allocation5 + $0x40] sm:$0xff]
    %v113 = vld [vmem:[#allocation5 + $0x48] sm:$0xff]
    %v114 = vld [vmem:[#allocation5 + $0x50] sm:$0xff]
    %v115 = vld [vmem:[#allocation5 + $0x58] sm:$0xff]
    %v116 = vld [vmem:[#allocation5 + $0x60] sm:$0xff]
    %v117 = vld [vmem:[#allocation5 + $0x68] sm:$0xff]
    %v118 = vld [vmem:[#allocation5 + $0x70] sm:$0xff]
    %v119 = vld [vmem:[#allocation5 + $0x78] sm:$0xff]
    %v120 = vld [vmem:[#allocation5 + $0x80] sm:$0xff]
    %v121 = vld [vmem:[#allocation5 + $0x88] sm:$0xff]
    %v122 = vld [vmem:[#allocation5 + $0x90] sm:$0xff]
    %v123 = vld [vmem:[#allocation5 + $0x98] sm:$0xff]
    %v124 = vld [vmem:[#allocation5 + $0xa0] sm:$0xff]
    %v125 = vld [vmem:[#allocation5 + $0xa8] sm:$0xff]
    %v126 = vld [vmem:[#allocation5 + $0xb0] sm:$0xff]
    %v127 = vld [vmem:[#allocation5 + $0xb8] sm:$0xff]
    %v128 = vld [vmem:[#allocation5 + $0xc0] sm:$0xff]
    %v129 = vld [vmem:[#allocation5 + $0xc8] sm:$0xff]
    %v130 = vld [vmem:[#allocation5 + $0xd0] sm:$0xff]
    %v131 = vld [vmem:[#allocation5 + $0xd8] sm:$0xff]
    %v132 = vld [vmem:[#allocation5 + $0xe0] sm:$0xff]
    %v133 = vld [vmem:[#allocation5 + $0xe8] sm:$0xff]
    %v134 = vld [vmem:[#allocation5 + $0xf0] sm:$0xff]
    %v135 = vld [vmem:[#allocation5 + $0xf8] sm:$0xff]
    %v136 = vld [vmem:[#allocation5 + $0x100] sm:$0xff]
    %v137 = vld [vmem:[#allocation5 + $0x108] sm:$0xff]
    %v138 = vld [vmem:[#allocation5 + $0x110] sm:$0xff]
    %v139 = vld [vmem:[#allocation5 + $0x118] sm:$0xff]
    %v140 = vld [vmem:[#allocation5 + $0x120] sm:$0xff]
    %v141 = vld [vmem:[#allocation5 + $0x128] sm:$0xff]
    %v142 = vld [vmem:[#allocation5 + $0x130] sm:$0xff]
    %v143 = vld [vmem:[#allocation5 + $0x138] sm:$0xff]
    %v144 = vld [vmem:[#allocation5 + $0x140] sm:$0xff]
    %v145 = vld [vmem:[#allocation5 + $0x148] sm:$0xff]
    %v146 = vld [vmem:[#allocation5 + $0x150] sm:$0xff]
    %v147 = vld [vmem:[#allocation5 + $0x158] sm:$0xff]
    %v148 = vld [vmem:[#allocation5 + $0x160] sm:$0xff]
    %v149 = vld [vmem:[#allocation5 + $0x168] sm:$0xff]
    %v150 = vld [vmem:[#allocation5 + $0x170] sm:$0xff]
    %v151 = vld [vmem:[#allocation5 + $0x178] sm:$0xff]
    %v152 = vld [vmem:[#allocation5 + $0x180] sm:$0xff]
    %v153 = vld [vmem:[#allocation5 + $0x188] sm:$0xff]
    %v154 = vld [vmem:[#allocation5 + $0x190] sm:$0xff]
    %v155 = vld [vmem:[#allocation5 + $0x198] sm:$0xff]
    %v156 = vld [vmem:[#allocation5 + $0x1a0] sm:$0xff]
    %v157 = vld [vmem:[#allocation5 + $0x1a8] sm:$0xff]
    %v158 = vld [vmem:[#allocation5 + $0x1b0] sm:$0xff]
    %v159 = vld [vmem:[#allocation5 + $0x1b8] sm:$0xff]
    %v160 = vld [vmem:[#allocation5 + $0x1c0] sm:$0xff]
    %v161 = vld [vmem:[#allocation5 + $0x1c8] sm:$0xff]
    %v162 = vld [vmem:[#allocation5 + $0x1d0] sm:$0xff]
    %v163 = vld [vmem:[#allocation5 + $0x1d8] sm:$0xff]
    %v164 = vld [vmem:[#allocation5 + $0x1e0] sm:$0xff]
    %v165 = vld [vmem:[#allocation5 + $0x1e8] sm:$0xff]
    %v166 = vld [vmem:[#allocation5 + $0x1f0] sm:$0xff]
    %v167 = vld [vmem:[#allocation5 + $0x1f8] sm:$0xff]
    %v168 = vld [vmem:[#allocation5 + $0x200] sm:$0xff]
    %v169 = vld [vmem:[#allocation5 + $0x208] sm:$0xff]
    %v170 = vld [vmem:[#allocation5 + $0x210] sm:$0xff]
    %v171 = vld [vmem:[#allocation5 + $0x218] sm:$0xff]
    %v172 = vld [vmem:[#allocation5 + $0x220] sm:$0xff]
    %v173 = vld [vmem:[#allocation5 + $0x228] sm:$0xff]
    %v174 = vld [vmem:[#allocation5 + $0x230] sm:$0xff]
    %v175 = vld [vmem:[#allocation5 + $0x238] sm:$0xff]
    %v176 = vld [vmem:[#allocation5 + $0x240] sm:$0xff]
    %v177 = vld [vmem:[#allocation5 + $0x248] sm:$0xff]
    %v178 = vld [vmem:[#allocation5 + $0x250] sm:$0xff]
    %v179 = vld [vmem:[#allocation5 + $0x258] sm:$0xff]
    %v180 = vld [vmem:[#allocation5 + $0x260] sm:$0xff]
    %v181 = vld [vmem:[#allocation5 + $0x268] sm:$0xff]
    %v182 = vld [vmem:[#allocation5 + $0x270] sm:$0xff]
    %v183 = vld [vmem:[#allocation5 + $0x278] sm:$0xff]
    %v184 = vld [vmem:[#allocation5 + $0x280] sm:$0xff]
    %v185 = vld [vmem:[#allocation5 + $0x288] sm:$0xff]
    %v186 = vld [vmem:[#allocation5 + $0x290] sm:$0xff]
    %v187 = vld [vmem:[#allocation5 + $0x298] sm:$0xff]
    %v188 = vld [vmem:[#allocation5 + $0x2a0] sm:$0xff]
    %v189 = vld [vmem:[#allocation5 + $0x2a8] sm:$0xff]
    %v190 = vld [vmem:[#allocation5 + $0x2b0] sm:$0xff]
    %v191 = vld [vmem:[#allocation5 + $0x2b8] sm:$0xff]
    %v192 = vld [vmem:[#allocation5 + $0x2c0] sm:$0xff]
    %v193 = vld [vmem:[#allocation5 + $0x2c8] sm:$0xff]
    %v194 = vld [vmem:[#allocation5 + $0x2d0] sm:$0xff]
    %v195 = vld [vmem:[#allocation5 + $0x2d8] sm:$0xff]
    %v196 = vld [vmem:[#allocation5 + $0x2e0] sm:$0xff]
    %v197 = vld [vmem:[#allocation5 + $0x2e8] sm:$0xff]
    %v198 = vld [vmem:[#allocation5 + $0x2f0] sm:$0xff]
    %v199 = vld [vmem:[#allocation5 + $0x2f8] sm:$0xff]
    %v201 = vlaneseq
    %v202 = vshrl.u32 %v201, 7
    %v203 = vsub.s32 0, %v202
    %v204 = vrot.slane %v103, %v203
    %v205 = vlaneseq
    %v206 = vshrl.u32 %v205, 7
    %v207 = vsub.s32 4, %v206
    %v208 = vrot.slane %v103, %v207
    %v211 = vlaneseq
    %v212 = vshrl.u32 %v211, 7
    %v213 = vsub.s32 0, %v212
    %v214 = vrot.slane %v204, %v213
    %v215 = vlaneseq
    %v216 = vshrl.u32 %v215, 7
    %v217 = vsub.s32 0, %v216
    %v218 = vrot.slane %v208, %v217
    %v315 = vunpack.c.l.b16 %v104
    %v316 = vunpack.c.h.b16 %v104
    %v317 = vunpack.c.l.b16 %v105
    %v318 = vunpack.c.h.b16 %v105
    %v319 = vunpack.c.l.b16 %v106
    %v320 = vunpack.c.h.b16 %v106
    %v321 = vunpack.c.l.b16 %v107
    %v322 = vunpack.c.h.b16 %v107
    %v323 = vunpack.c.l.b16 %v108
    %v324 = vunpack.c.h.b16 %v108
    %v325 = vunpack.c.l.b16 %v109
    %v326 = vunpack.c.h.b16 %v109
    %v327 = vunpack.c.l.b16 %v110
    %v328 = vunpack.c.h.b16 %v110
    %v329 = vunpack.c.l.b16 %v111
    %v330 = vunpack.c.h.b16 %v111
    %v331 = vunpack.c.l.b16 %v112
    %v332 = vunpack.c.h.b16 %v112
    %v333 = vunpack.c.l.b16 %v113
    %v334 = vunpack.c.h.b16 %v113
    %v335 = vunpack.c.l.b16 %v114
    %v336 = vunpack.c.h.b16 %v114
    %v337 = vunpack.c.l.b16 %v115
    %v338 = vunpack.c.h.b16 %v115
    %v339 = vunpack.c.l.b16 %v116
    %v340 = vunpack.c.h.b16 %v116
    %v341 = vunpack.c.l.b16 %v117
    %v342 = vunpack.c.h.b16 %v117
    %v343 = vunpack.c.l.b16 %v118
    %v344 = vunpack.c.h.b16 %v118
    %v345 = vunpack.c.l.b16 %v119
    %v346 = vunpack.c.h.b16 %v119
    %v347 = vunpack.c.l.b16 %v120
    %v348 = vunpack.c.h.b16 %v120
    %v349 = vunpack.c.l.b16 %v121
    %v350 = vunpack.c.h.b16 %v121
    %v351 = vunpack.c.l.b16 %v122
    %v352 = vunpack.c.h.b16 %v122
    %v353 = vunpack.c.l.b16 %v123
    %v354 = vunpack.c.h.b16 %v123
    %v355 = vunpack.c.l.b16 %v124
    %v356 = vunpack.c.h.b16 %v124
    %v357 = vunpack.c.l.b16 %v125
    %v358 = vunpack.c.h.b16 %v125
    %v359 = vunpack.c.l.b16 %v126
    %v360 = vunpack.c.h.b16 %v126
    %v361 = vunpack.c.l.b16 %v127
    %v362 = vunpack.c.h.b16 %v127
    %v363 = vunpack.c.l.b16 %v128
    %v364 = vunpack.c.h.b16 %v128
    %v365 = vunpack.c.l.b16 %v129
    %v366 = vunpack.c.h.b16 %v129
    %v367 = vunpack.c.l.b16 %v130
    %v368 = vunpack.c.h.b16 %v130
    %v369 = vunpack.c.l.b16 %v131
    %v370 = vunpack.c.h.b16 %v131
    %v371 = vunpack.c.l.b16 %v132
    %v372 = vunpack.c.h.b16 %v132
    %v373 = vunpack.c.l.b16 %v133
    %v374 = vunpack.c.h.b16 %v133
    %v375 = vunpack.c.l.b16 %v134
    %v376 = vunpack.c.h.b16 %v134
    %v377 = vunpack.c.l.b16 %v135
    %v378 = vunpack.c.h.b16 %v135
    %v379 = vunpack.c.l.b16 %v136
    %v380 = vunpack.c.h.b16 %v136
    %v381 = vunpack.c.l.b16 %v137
    %v382 = vunpack.c.h.b16 %v137
    %v383 = vunpack.c.l.b16 %v138
    %v384 = vunpack.c.h.b16 %v138
    %v385 = vunpack.c.l.b16 %v139
    %v386 = vunpack.c.h.b16 %v139
    %v387 = vunpack.c.l.b16 %v140
    %v388 = vunpack.c.h.b16 %v140
    %v389 = vunpack.c.l.b16 %v141
    %v390 = vunpack.c.h.b16 %v141
    %v391 = vunpack.c.l.b16 %v142
    %v392 = vunpack.c.h.b16 %v142
    %v393 = vunpack.c.l.b16 %v143
    %v394 = vunpack.c.h.b16 %v143
    %v395 = vunpack.c.l.b16 %v144
    %v396 = vunpack.c.h.b16 %v144
    %v397 = vunpack.c.l.b16 %v145
    %v398 = vunpack.c.h.b16 %v145
    %v399 = vunpack.c.l.b16 %v146
    %v400 = vunpack.c.h.b16 %v146
    %v401 = vunpack.c.l.b16 %v147
    %v402 = vunpack.c.h.b16 %v147
    %v403 = vunpack.c.l.b16 %v148
    %v404 = vunpack.c.h.b16 %v148
    %v405 = vunpack.c.l.b16 %v149
    %v406 = vunpack.c.h.b16 %v149
    %v407 = vunpack.c.l.b16 %v150
    %v408 = vunpack.c.h.b16 %v150
    %v409 = vunpack.c.l.b16 %v151
    %v410 = vunpack.c.h.b16 %v151
    %v411 = vunpack.c.l.b16 %v152
    %v412 = vunpack.c.h.b16 %v152
    %v413 = vunpack.c.l.b16 %v153
    %v414 = vunpack.c.h.b16 %v153
    %v415 = vunpack.c.l.b16 %v154
    %v416 = vunpack.c.h.b16 %v154
    %v417 = vunpack.c.l.b16 %v155
    %v418 = vunpack.c.h.b16 %v155
    %v419 = vunpack.c.l.b16 %v156
    %v420 = vunpack.c.h.b16 %v156
    %v421 = vunpack.c.l.b16 %v157
    %v422 = vunpack.c.h.b16 %v157
    %v423 = vunpack.c.l.b16 %v158
    %v424 = vunpack.c.h.b16 %v158
    %v425 = vunpack.c.l.b16 %v159
    %v426 = vunpack.c.h.b16 %v159
    %v427 = vunpack.c.l.b16 %v160
    %v428 = vunpack.c.h.b16 %v160
    %v429 = vunpack.c.l.b16 %v161
    %v430 = vunpack.c.h.b16 %v161
    %v431 = vunpack.c.l.b16 %v162
    %v432 = vunpack.c.h.b16 %v162
    %v433 = vunpack.c.l.b16 %v163
    %v434 = vunpack.c.h.b16 %v163
    %v435 = vunpack.c.l.b16 %v164
    %v436 = vunpack.c.h.b16 %v164
    %v437 = vunpack.c.l.b16 %v165
    %v438 = vunpack.c.h.b16 %v165
    %v439 = vunpack.c.l.b16 %v166
    %v440 = vunpack.c.h.b16 %v166
    %v441 = vunpack.c.l.b16 %v167
    %v442 = vunpack.c.h.b16 %v167
    %v443 = vunpack.c.l.b16 %v168
    %v444 = vunpack.c.h.b16 %v168
    %v445 = vunpack.c.l.b16 %v169
    %v446 = vunpack.c.h.b16 %v169
    %v447 = vunpack.c.l.b16 %v170
    %v448 = vunpack.c.h.b16 %v170
    %v449 = vunpack.c.l.b16 %v171
    %v450 = vunpack.c.h.b16 %v171
    %v451 = vunpack.c.l.b16 %v172
    %v452 = vunpack.c.h.b16 %v172
    %v453 = vunpack.c.l.b16 %v173
    %v454 = vunpack.c.h.b16 %v173
    %v455 = vunpack.c.l.b16 %v174
    %v456 = vunpack.c.h.b16 %v174
    %v457 = vunpack.c.l.b16 %v175
    %v458 = vunpack.c.h.b16 %v175
    %v459 = vunpack.c.l.b16 %v176
    %v460 = vunpack.c.h.b16 %v176
    %v461 = vunpack.c.l.b16 %v177
    %v462 = vunpack.c.h.b16 %v177
    %v463 = vunpack.c.l.b16 %v178
    %v464 = vunpack.c.h.b16 %v178
    %v465 = vunpack.c.l.b16 %v179
    %v466 = vunpack.c.h.b16 %v179
    %v467 = vunpack.c.l.b16 %v180
    %v468 = vunpack.c.h.b16 %v180
    %v469 = vunpack.c.l.b16 %v181
    %v470 = vunpack.c.h.b16 %v181
    %v471 = vunpack.c.l.b16 %v182
    %v472 = vunpack.c.h.b16 %v182
    %v473 = vunpack.c.l.b16 %v183
    %v474 = vunpack.c.h.b16 %v183
    %v475 = vunpack.c.l.b16 %v184
    %v476 = vunpack.c.h.b16 %v184
    %v477 = vunpack.c.l.b16 %v185
    %v478 = vunpack.c.h.b16 %v185
    %v479 = vunpack.c.l.b16 %v186
    %v480 = vunpack.c.h.b16 %v186
    %v481 = vunpack.c.l.b16 %v187
    %v482 = vunpack.c.h.b16 %v187
    %v483 = vunpack.c.l.b16 %v188
    %v484 = vunpack.c.h.b16 %v188
    %v485 = vunpack.c.l.b16 %v189
    %v486 = vunpack.c.h.b16 %v189
    %v487 = vunpack.c.l.b16 %v190
    %v488 = vunpack.c.h.b16 %v190
    %v489 = vunpack.c.l.b16 %v191
    %v490 = vunpack.c.h.b16 %v191
    %v491 = vunpack.c.l.b16 %v192
    %v492 = vunpack.c.h.b16 %v192
    %v493 = vunpack.c.l.b16 %v193
    %v494 = vunpack.c.h.b16 %v193
    %v495 = vunpack.c.l.b16 %v194
    %v496 = vunpack.c.h.b16 %v194
    %v497 = vunpack.c.l.b16 %v195
    %v498 = vunpack.c.h.b16 %v195
    %v499 = vunpack.c.l.b16 %v196
    %v500 = vunpack.c.h.b16 %v196
    %v501 = vunpack.c.l.b16 %v197
    %v502 = vunpack.c.h.b16 %v197
    %v503 = vunpack.c.l.b16 %v198
    %v504 = vunpack.c.h.b16 %v198
    %v505 = vunpack.c.l.b16 %v199
    %v506 = vunpack.c.h.b16 %v199
    %v507 = vpack.c.b16 %v317, %v315
    %v508 = vpack.c.b16 %v318, %v316
    %v509 = vpack.c.b16 %v321, %v319
    %v510 = vpack.c.b16 %v322, %v320
    %v511 = vpack.c.b16 %v325, %v323
    %v512 = vpack.c.b16 %v326, %v324
    %v513 = vpack.c.b16 %v329, %v327
    %v514 = vpack.c.b16 %v330, %v328
    %v515 = vpack.c.b16 %v333, %v331
    %v516 = vpack.c.b16 %v334, %v332
    %v517 = vpack.c.b16 %v337, %v335
    %v518 = vpack.c.b16 %v338, %v336
    %v519 = vpack.c.b16 %v341, %v339
    %v520 = vpack.c.b16 %v342, %v340
    %v521 = vpack.c.b16 %v345, %v343
    %v522 = vpack.c.b16 %v346, %v344
    %v523 = vpack.c.b16 %v349, %v347
    %v524 = vpack.c.b16 %v350, %v348
    %v525 = vpack.c.b16 %v353, %v351
    %v526 = vpack.c.b16 %v354, %v352
    %v527 = vpack.c.b16 %v357, %v355
    %v528 = vpack.c.b16 %v358, %v356
    %v529 = vpack.c.b16 %v361, %v359
    %v530 = vpack.c.b16 %v362, %v360
    %v531 = vpack.c.b16 %v365, %v363
    %v532 = vpack.c.b16 %v366, %v364
    %v533 = vpack.c.b16 %v369, %v367
    %v534 = vpack.c.b16 %v370, %v368
    %v535 = vpack.c.b16 %v373, %v371
    %v536 = vpack.c.b16 %v374, %v372
    %v537 = vpack.c.b16 %v377, %v375
    %v538 = vpack.c.b16 %v378, %v376
    %v539 = vpack.c.b16 %v381, %v379
    %v540 = vpack.c.b16 %v382, %v380
    %v541 = vpack.c.b16 %v385, %v383
    %v542 = vpack.c.b16 %v386, %v384
    %v543 = vpack.c.b16 %v389, %v387
    %v544 = vpack.c.b16 %v390, %v388
    %v545 = vpack.c.b16 %v393, %v391
    %v546 = vpack.c.b16 %v394, %v392
    %v547 = vpack.c.b16 %v397, %v395
    %v548 = vpack.c.b16 %v398, %v396
    %v549 = vpack.c.b16 %v401, %v399
    %v550 = vpack.c.b16 %v402, %v400
    %v551 = vpack.c.b16 %v405, %v403
    %v552 = vpack.c.b16 %v406, %v404
    %v553 = vpack.c.b16 %v409, %v407
    %v554 = vpack.c.b16 %v410, %v408
    %v555 = vpack.c.b16 %v413, %v411
    %v556 = vpack.c.b16 %v414, %v412
    %v557 = vpack.c.b16 %v417, %v415
    %v558 = vpack.c.b16 %v418, %v416
    %v559 = vpack.c.b16 %v421, %v419
    %v560 = vpack.c.b16 %v422, %v420
    %v561 = vpack.c.b16 %v425, %v423
    %v562 = vpack.c.b16 %v426, %v424
    %v563 = vpack.c.b16 %v429, %v427
    %v564 = vpack.c.b16 %v430, %v428
    %v565 = vpack.c.b16 %v433, %v431
    %v566 = vpack.c.b16 %v434, %v432
    %v567 = vpack.c.b16 %v437, %v435
    %v568 = vpack.c.b16 %v438, %v436
    %v569 = vpack.c.b16 %v441, %v439
    %v570 = vpack.c.b16 %v442, %v440
    %v571 = vpack.c.b16 %v445, %v443
    %v572 = vpack.c.b16 %v446, %v444
    %v573 = vpack.c.b16 %v449, %v447
    %v574 = vpack.c.b16 %v450, %v448
    %v575 = vpack.c.b16 %v453, %v451
    %v576 = vpack.c.b16 %v454, %v452
    %v577 = vpack.c.b16 %v457, %v455
    %v578 = vpack.c.b16 %v458, %v456
    %v579 = vpack.c.b16 %v461, %v459
    %v580 = vpack.c.b16 %v462, %v460
    %v581 = vpack.c.b16 %v465, %v463
    %v582 = vpack.c.b16 %v466, %v464
    %v583 = vpack.c.b16 %v469, %v467
    %v584 = vpack.c.b16 %v470, %v468
    %v585 = vpack.c.b16 %v473, %v471
    %v586 = vpack.c.b16 %v474, %v472
    %v587 = vpack.c.b16 %v477, %v475
    %v588 = vpack.c.b16 %v478, %v476
    %v589 = vpack.c.b16 %v481, %v479
    %v590 = vpack.c.b16 %v482, %v480
    %v591 = vpack.c.b16 %v485, %v483
    %v592 = vpack.c.b16 %v486, %v484
    %v593 = vpack.c.b16 %v489, %v487
    %v594 = vpack.c.b16 %v490, %v488
    %v595 = vpack.c.b16 %v493, %v491
    %v596 = vpack.c.b16 %v494, %v492
    %v597 = vpack.c.b16 %v497, %v495
    %v598 = vpack.c.b16 %v498, %v496
    %v599 = vpack.c.b16 %v501, %v499
    %v600 = vpack.c.b16 %v502, %v500
    %v601 = vpack.c.b16 %v505, %v503
    %v602 = vpack.c.b16 %v506, %v504
    %699 = vmatprep.subr.bf16.mxu0 %v522
    %700 = vmatpush1.bf16.msra.mxu0 %v521
    %701 = vmatprep.subr.bf16.mxu0 %v520
    %702 = vmatpush1.bf16.msra.mxu0 %v519
    %703 = vmatprep.subr.bf16.mxu0 %v518
    %704 = vmatpush1.bf16.msra.mxu0 %v517
    %705 = vmatprep.subr.bf16.mxu0 %v516
    %706 = vmatpush1.bf16.msra.mxu0 %v515
    %707 = vmatprep.subr.bf16.mxu0 %v514
    %708 = vmatpush1.bf16.msra.mxu0 %v513
    %709 = vmatprep.subr.bf16.mxu0 %v512
    %710 = vmatpush1.bf16.msra.mxu0 %v511
    %711 = vmatprep.subr.bf16.mxu0 %v510
    %712 = vmatpush1.bf16.msra.mxu0 %v509
    %713 = vmatprep.subr.bf16.mxu0 %v508
    %714 = vmatpush1.bf16.msra.mxu0 %v507
    %715 = vmatprep.subr.bf16.mxu0 %v538
    %716 = vmatpush2.bf16.msra.mxu0 %v537
    %717 = vmatprep.subr.bf16.mxu0 %v536
    %718 = vmatpush2.bf16.msra.mxu0 %v535
    %719 = vmatprep.subr.bf16.mxu0 %v534
    %720 = vmatpush2.bf16.msra.mxu0 %v533
    %721 = vmatprep.subr.bf16.mxu0 %v532
    %722 = vmatpush2.bf16.msra.mxu0 %v531
    %723 = vmatprep.subr.bf16.mxu0 %v530
    %724 = vmatpush2.bf16.msra.mxu0 %v529
    %725 = vmatprep.subr.bf16.mxu0 %v528
    %726 = vmatpush2.bf16.msra.mxu0 %v527
    %727 = vmatprep.subr.bf16.mxu0 %v526
    %728 = vmatpush2.bf16.msra.mxu0 %v525
    %729 = vmatprep.subr.bf16.mxu0 %v524
    %730 = vmatpush2.bf16.msra.mxu0 %v523
    %731 = vmatprep.mubr.bf16.mxu0 %v98
    %732 = vmatmul.mubr.bf16.gmra.mxu0 %v97
    %v733 = vpop.f32.mrf.mxu0
    %v734 = vadd.f32 %v214, %v733
    %v735 = vpop.f32.mrf.mxu0
    %v736 = vadd.f32 %v218, %v735
    %v737 = vpop.f32.mrf.mxu0
    %v738 = vpop.f32.mrf.mxu0
    %739 = vdwg.mxu0
    %740 = vmatprep.subr.bf16.mxu0 %v554
    %741 = vmatpush1.bf16.msra.mxu0 %v553
    %742 = vmatprep.subr.bf16.mxu0 %v552
    %743 = vmatpush1.bf16.msra.mxu0 %v551
    %744 = vmatprep.subr.bf16.mxu0 %v550
    %745 = vmatpush1.bf16.msra.mxu0 %v549
    %746 = vmatprep.subr.bf16.mxu0 %v548
    %747 = vmatpush1.bf16.msra.mxu0 %v547
    %748 = vmatprep.subr.bf16.mxu0 %v546
    %749 = vmatpush1.bf16.msra.mxu0 %v545
    %750 = vmatprep.subr.bf16.mxu0 %v544
    %751 = vmatpush1.bf16.msra.mxu0 %v543
    %752 = vmatprep.subr.bf16.mxu0 %v542
    %753 = vmatpush1.bf16.msra.mxu0 %v541
    %754 = vmatprep.subr.bf16.mxu0 %v540
    %755 = vmatpush1.bf16.msra.mxu0 %v539
    %756 = vmatprep.subr.bf16.mxu0 %v570
    %757 = vmatpush2.bf16.msra.mxu0 %v569
    %758 = vmatprep.subr.bf16.mxu0 %v568
    %759 = vmatpush2.bf16.msra.mxu0 %v567
    %760 = vmatprep.subr.bf16.mxu0 %v566
    %761 = vmatpush2.bf16.msra.mxu0 %v565
    %762 = vmatprep.subr.bf16.mxu0 %v564
    %763 = vmatpush2.bf16.msra.mxu0 %v563
    %764 = vmatprep.subr.bf16.mxu0 %v562
    %765 = vmatpush2.bf16.msra.mxu0 %v561
    %766 = vmatprep.subr.bf16.mxu0 %v560
    %767 = vmatpush2.bf16.msra.mxu0 %v559
    %768 = vmatprep.subr.bf16.mxu0 %v558
    %769 = vmatpush2.bf16.msra.mxu0 %v557
    %770 = vmatprep.subr.bf16.mxu0 %v556
    %771 = vmatpush2.bf16.msra.mxu0 %v555
    %772 = vmatprep.mubr.bf16.mxu0 %v100
    %773 = vmatmul.mubr.bf16.gmra.mxu0 %v99
    %v774 = vpop.f32.mrf.mxu0
    %v775 = vadd.f32 %v734, %v774
    %v776 = vpop.f32.mrf.mxu0
    %v777 = vadd.f32 %v736, %v776
    %v778 = vpop.f32.mrf.mxu0
    %v779 = vpop.f32.mrf.mxu0
    %780 = vdwg.mxu0
    %781 = vmatprep.subr.bf16.mxu0 %v586
    %782 = vmatpush1.bf16.msra.mxu0 %v585
    %783 = vmatprep.subr.bf16.mxu0 %v584
    %784 = vmatpush1.bf16.msra.mxu0 %v583
    %785 = vmatprep.subr.bf16.mxu0 %v582
    %786 = vmatpush1.bf16.msra.mxu0 %v581
    %787 = vmatprep.subr.bf16.mxu0 %v580
    %788 = vmatpush1.bf16.msra.mxu0 %v579
    %789 = vmatprep.subr.bf16.mxu0 %v578
    %790 = vmatpush1.bf16.msra.mxu0 %v577
    %791 = vmatprep.subr.bf16.mxu0 %v576
    %792 = vmatpush1.bf16.msra.mxu0 %v575
    %793 = vmatprep.subr.bf16.mxu0 %v574
    %794 = vmatpush1.bf16.msra.mxu0 %v573
    %795 = vmatprep.subr.bf16.mxu0 %v572
    %796 = vmatpush1.bf16.msra.mxu0 %v571
    %797 = vmatprep.subr.bf16.mxu0 %v602
    %798 = vmatpush2.bf16.msra.mxu0 %v601
    %799 = vmatprep.subr.bf16.mxu0 %v600
    %800 = vmatpush2.bf16.msra.mxu0 %v599
    %801 = vmatprep.subr.bf16.mxu0 %v598
    %802 = vmatpush2.bf16.msra.mxu0 %v597
    %803 = vmatprep.subr.bf16.mxu0 %v596
    %804 = vmatpush2.bf16.msra.mxu0 %v595
    %805 = vmatprep.subr.bf16.mxu0 %v594
    %806 = vmatpush2.bf16.msra.mxu0 %v593
    %807 = vmatprep.subr.bf16.mxu0 %v592
    %808 = vmatpush2.bf16.msra.mxu0 %v591
    %809 = vmatprep.subr.bf16.mxu0 %v590
    %810 = vmatpush2.bf16.msra.mxu0 %v589
    %811 = vmatprep.subr.bf16.mxu0 %v588
    %812 = vmatpush2.bf16.msra.mxu0 %v587
    %813 = vmatprep.mubr.bf16.mxu0 %v102
    %814 = vmatmul.mubr.bf16.gmra.mxu0 %v101
    %v815 = vpop.f32.mrf.mxu0
    %v816 = vadd.f32 %v775, %v815
    %v817 = vpop.f32.mrf.mxu0
    %v818 = vadd.f32 %v777, %v817
    %v819 = vpop.f32.mrf.mxu0
    %v820 = vpop.f32.mrf.mxu0
    %821 = vdwg.mxu0
    %v822 = vmax.f32 %v816, 0.0
    %v823 = vmax.f32 %v818, 0.0
    %v824 = vpack.c.bf16 %v822, %v822
    %v825 = vpack.c.bf16 %v823, %v823
    %v826 = vld [vmem:[#allocation7] sm:$0xf]
    %v827 = vld [vmem:[#allocation7 + $0x4] sm:$0xf]
    %v828 = vld [vmem:[#allocation7 + $0x8] sm:$0xf]
    %v829 = vld [vmem:[#allocation7 + $0xc] sm:$0xf]
    %v830 = vld [vmem:[#allocation7 + $0x10] sm:$0xf]
    %v831 = vld [vmem:[#allocation7 + $0x14] sm:$0xf]
    %v832 = vld [vmem:[#allocation7 + $0x18] sm:$0xf]
    %v833 = vld [vmem:[#allocation7 + $0x1c] sm:$0xf]
    %v834 = vld [vmem:[#allocation7 + $0x20] sm:$0xf]
    %v835 = vld [vmem:[#allocation7 + $0x24] sm:$0xf]
    %v836 = vld [vmem:[#allocation7 + $0x28] sm:$0xf]
    %v837 = vld [vmem:[#allocation7 + $0x2c] sm:$0xf]
    %v838 = vld [vmem:[#allocation7 + $0x30] sm:$0xf]
    %v839 = vld [vmem:[#allocation7 + $0x34] sm:$0xf]
    %v840 = vld [vmem:[#allocation7 + $0x38] sm:$0xf]
    %v841 = vld [vmem:[#allocation7 + $0x3c] sm:$0xf]
    %v842 = vld [vmem:[#allocation7 + $0x40] sm:$0xf]
    %v843 = vld [vmem:[#allocation7 + $0x44] sm:$0xf]
    %v844 = vld [vmem:[#allocation7 + $0x48] sm:$0xf]
    %v845 = vld [vmem:[#allocation7 + $0x4c] sm:$0xf]
    %v846 = vld [vmem:[#allocation7 + $0x50] sm:$0xf]
    %v847 = vld [vmem:[#allocation7 + $0x54] sm:$0xf]
    %v848 = vld [vmem:[#allocation7 + $0x58] sm:$0xf]
    %v849 = vld [vmem:[#allocation7 + $0x5c] sm:$0xf]
    %v850 = vld [vmem:[#allocation7 + $0x60] sm:$0xf]
    %v851 = vld [vmem:[#allocation7 + $0x64] sm:$0xf]
    %v852 = vld [vmem:[#allocation7 + $0x68] sm:$0xf]
    %v853 = vld [vmem:[#allocation7 + $0x6c] sm:$0xf]
    %v854 = vld [vmem:[#allocation7 + $0x70] sm:$0xf]
    %v855 = vld [vmem:[#allocation7 + $0x74] sm:$0xf]
    %v856 = vld [vmem:[#allocation7 + $0x78] sm:$0xf]
    %v857 = vld [vmem:[#allocation7 + $0x7c] sm:$0xf]
    %v858 = vlaneseq
    %v859 = vshrl.u32 %v858, 7
    %v860 = vsub.s32 1, %v859
    %v861 = vrot.slane %v103, %v860
    %v894 = vunpack.c.l.b16 %v826
    %v895 = vunpack.c.l.b16 %v827
    %v896 = vunpack.c.l.b16 %v828
    %v897 = vunpack.c.l.b16 %v829
    %v898 = vunpack.c.l.b16 %v830
    %v899 = vunpack.c.l.b16 %v831
    %v900 = vunpack.c.l.b16 %v832
    %v901 = vunpack.c.l.b16 %v833
    %v902 = vunpack.c.l.b16 %v834
    %v903 = vunpack.c.l.b16 %v835
    %v904 = vunpack.c.l.b16 %v836
    %v905 = vunpack.c.l.b16 %v837
    %v906 = vunpack.c.l.b16 %v838
    %v907 = vunpack.c.l.b16 %v839
    %v908 = vunpack.c.l.b16 %v840
    %v909 = vunpack.c.l.b16 %v841
    %v910 = vunpack.c.l.b16 %v842
    %v911 = vunpack.c.l.b16 %v843
    %v912 = vunpack.c.l.b16 %v844
    %v913 = vunpack.c.l.b16 %v845
    %v914 = vunpack.c.l.b16 %v846
    %v915 = vunpack.c.l.b16 %v847
    %v916 = vunpack.c.l.b16 %v848
    %v917 = vunpack.c.l.b16 %v849
    %v918 = vunpack.c.l.b16 %v850
    %v919 = vunpack.c.l.b16 %v851
    %v920 = vunpack.c.l.b16 %v852
    %v921 = vunpack.c.l.b16 %v853
    %v922 = vunpack.c.l.b16 %v854
    %v923 = vunpack.c.l.b16 %v855
    %v924 = vunpack.c.l.b16 %v856
    %v925 = vunpack.c.l.b16 %v857
    %v926 = vpack.c.b16 %v895, %v894
    %v927 = vpack.c.b16 %v897, %v896
    %v928 = vpack.c.b16 %v899, %v898
    %v929 = vpack.c.b16 %v901, %v900
    %v930 = vpack.c.b16 %v903, %v902
    %v931 = vpack.c.b16 %v905, %v904
    %v932 = vpack.c.b16 %v907, %v906
    %v933 = vpack.c.b16 %v909, %v908
    %v934 = vpack.c.b16 %v911, %v910
    %v935 = vpack.c.b16 %v913, %v912
    %v936 = vpack.c.b16 %v915, %v914
    %v937 = vpack.c.b16 %v917, %v916
    %v938 = vpack.c.b16 %v919, %v918
    %v939 = vpack.c.b16 %v921, %v920
    %v940 = vpack.c.b16 %v923, %v922
    %v941 = vpack.c.b16 %v925, %v924
    %958 = vmatprep.subr.bf16.mxu0 0
    %959 = vmatpush1.bf16.msra.mxu0 %v933
    %960 = vmatprep.subr.bf16.mxu0 0
    %961 = vmatpush1.bf16.msra.mxu0 %v932
    %962 = vmatprep.subr.bf16.mxu0 0
    %963 = vmatpush1.bf16.msra.mxu0 %v931
    %964 = vmatprep.subr.bf16.mxu0 0
    %965 = vmatpush1.bf16.msra.mxu0 %v930
    %966 = vmatprep.subr.bf16.mxu0 0
    %967 = vmatpush1.bf16.msra.mxu0 %v929
    %968 = vmatprep.subr.bf16.mxu0 0
    %969 = vmatpush1.bf16.msra.mxu0 %v928
    %970 = vmatprep.subr.bf16.mxu0 0
    %971 = vmatpush1.bf16.msra.mxu0 %v927
    %972 = vmatprep.subr.bf16.mxu0 0
    %973 = vmatpush1.bf16.msra.mxu0 %v926
    %974 = vmatprep.subr.bf16.mxu0 0
    %975 = vmatpush2.bf16.msra.mxu0 %v941
    %976 = vmatprep.subr.bf16.mxu0 0
    %977 = vmatpush2.bf16.msra.mxu0 %v940
    %978 = vmatprep.subr.bf16.mxu0 0
    %979 = vmatpush2.bf16.msra.mxu0 %v939
    %980 = vmatprep.subr.bf16.mxu0 0
    %981 = vmatpush2.bf16.msra.mxu0 %v938
    %982 = vmatprep.subr.bf16.mxu0 0
    %983 = vmatpush2.bf16.msra.mxu0 %v937
    %984 = vmatprep.subr.bf16.mxu0 0
    %985 = vmatpush2.bf16.msra.mxu0 %v936
    %986 = vmatprep.subr.bf16.mxu0 0
    %987 = vmatpush2.bf16.msra.mxu0 %v935
    %988 = vmatprep.subr.bf16.mxu0 0
    %989 = vmatpush2.bf16.msra.mxu0 %v934
    %990 = vmatprep.mubr.bf16.mxu0 %v825
    %991 = vmatmul.mubr.bf16.gmra.mxu0 %v824
    %v992 = vpop.f32.mrf.mxu0
    %v993 = vadd.f32 %v861, %v992
    %v994 = vpop.f32.mrf.mxu0
    %v995 = vpop.f32.mrf.mxu0
    %v996 = vpop.f32.mrf.mxu0
    %997 = vdwg.mxu0
    %v998 = vmax.f32 %v993, 0.0
    %v999 = vpack.c.bf16 %v998, %v998
    %v1000 = vld [vmem:[#allocation8] sm:$0xf]
    %v1001 = vld [vmem:[#allocation8 + $0x4] sm:$0xf]
    %v1002 = vld [vmem:[#allocation8 + $0x8] sm:$0xf]
    %v1003 = vld [vmem:[#allocation8 + $0xc] sm:$0xf]
    %v1004 = vld [vmem:[#allocation8 + $0x10] sm:$0xf]
    %v1005 = vld [vmem:[#allocation8 + $0x14] sm:$0xf]
    %v1006 = vld [vmem:[#allocation8 + $0x18] sm:$0xf]
    %v1007 = vld [vmem:[#allocation8 + $0x1c] sm:$0xf]
    %v1008 = vld [vmem:[#allocation8 + $0x20] sm:$0xf]
    %v1009 = vld [vmem:[#allocation8 + $0x24] sm:$0xf]
    %v1010 = vld [vmem:[#allocation8 + $0x28] sm:$0xf]
    %v1011 = vld [vmem:[#allocation8 + $0x2c] sm:$0xf]
    %v1012 = vld [vmem:[#allocation8 + $0x30] sm:$0xf]
    %v1013 = vld [vmem:[#allocation8 + $0x34] sm:$0xf]
    %v1014 = vld [vmem:[#allocation8 + $0x38] sm:$0xf]
    %v1015 = vld [vmem:[#allocation8 + $0x3c] sm:$0xf]
    %v1016 = vlaneseq
    %v1017 = vshrl.u32 %v1016, 7
    %v1018 = vsub.s32 2, %v1017
    %v1019 = vrot.slane %v103, %v1018
    %v1036 = vunpack.c.l.b16 %v1000
    %v1037 = vunpack.c.l.b16 %v1001
    %v1038 = vunpack.c.l.b16 %v1002
    %v1039 = vunpack.c.l.b16 %v1003
    %v1040 = vunpack.c.l.b16 %v1004
    %v1041 = vunpack.c.l.b16 %v1005
    %v1042 = vunpack.c.l.b16 %v1006
    %v1043 = vunpack.c.l.b16 %v1007
    %v1044 = vunpack.c.l.b16 %v1008
    %v1045 = vunpack.c.l.b16 %v1009
    %v1046 = vunpack.c.l.b16 %v1010
    %v1047 = vunpack.c.l.b16 %v1011
    %v1048 = vunpack.c.l.b16 %v1012
    %v1049 = vunpack.c.l.b16 %v1013
    %v1050 = vunpack.c.l.b16 %v1014
    %v1051 = vunpack.c.l.b16 %v1015
    %v1052 = vpack.c.b16 %v1037, %v1036
    %v1053 = vpack.c.b16 %v1039, %v1038
    %v1054 = vpack.c.b16 %v1041, %v1040
    %v1055 = vpack.c.b16 %v1043, %v1042
    %v1056 = vpack.c.b16 %v1045, %v1044
    %v1057 = vpack.c.b16 %v1047, %v1046
    %v1058 = vpack.c.b16 %v1049, %v1048
    %v1059 = vpack.c.b16 %v1051, %v1050
    %1068 = vmatprep.subr.bf16.mxu0 0
    %1069 = vmatpush1.bf16.msra.mxu0 %v1059
    %1070 = vmatprep.subr.bf16.mxu0 0
    %1071 = vmatpush1.bf16.msra.mxu0 %v1058
    %1072 = vmatprep.subr.bf16.mxu0 0
    %1073 = vmatpush1.bf16.msra.mxu0 %v1057
    %1074 = vmatprep.subr.bf16.mxu0 0
    %1075 = vmatpush1.bf16.msra.mxu0 %v1056
    %1076 = vmatprep.subr.bf16.mxu0 0
    %1077 = vmatpush1.bf16.msra.mxu0 %v1055
    %1078 = vmatprep.subr.bf16.mxu0 0
    %1079 = vmatpush1.bf16.msra.mxu0 %v1054
    %1080 = vmatprep.subr.bf16.mxu0 0
    %1081 = vmatpush1.bf16.msra.mxu0 %v1053
    %1082 = vmatprep.subr.bf16.mxu0 0
    %1083 = vmatpush1.bf16.msra.mxu0 %v1052
    %1084 = vmatprep.subr.bf16.mxu0 0
    %1085 = vmatpush2.bf16.msra.mxu0 0
    %1086 = vmatprep.subr.bf16.mxu0 0
    %1087 = vmatpush2.bf16.msra.mxu0 0
    %1088 = vmatprep.subr.bf16.mxu0 0
    %1089 = vmatpush2.bf16.msra.mxu0 0
    %1090 = vmatprep.subr.bf16.mxu0 0
    %1091 = vmatpush2.bf16.msra.mxu0 0
    %1092 = vmatprep.subr.bf16.mxu0 0
    %1093 = vmatpush2.bf16.msra.mxu0 0
    %1094 = vmatprep.subr.bf16.mxu0 0
    %1095 = vmatpush2.bf16.msra.mxu0 0
    %1096 = vmatprep.subr.bf16.mxu0 0
    %1097 = vmatpush2.bf16.msra.mxu0 0
    %1098 = vmatprep.subr.bf16.mxu0 0
    %1099 = vmatpush2.bf16.msra.mxu0 0
    %1100 = vmatprep.mubr.bf16.mxu0 0
    %1101 = vmatmul.mubr.bf16.gmra.mxu0 %v999
    %v1102 = vpop.f32.mrf.mxu0
    %v1103 = vadd.f32 %v1019, %v1102
    %v1104 = vpop.f32.mrf.mxu0
    %v1105 = vpop.f32.mrf.mxu0
    %v1106 = vpop.f32.mrf.mxu0
    %1107 = vdwg.mxu0
    %v1108 = vmax.f32 %v1103, 0.0
    %v1109 = vpack.c.bf16 %v1108, %v1108
    %v1110 = vld [vmem:[#allocation10] sm:$0xf]
    %v1111 = vld [vmem:[#allocation10 + $0x4] sm:$0xf]
    %v1112 = vld [vmem:[#allocation10 + $0x8] sm:$0xf]
    %v1113 = vld [vmem:[#allocation10 + $0xc] sm:$0xf]
    %v1114 = vld [vmem:[#allocation10 + $0x10] sm:$0xf]
    %v1115 = vld [vmem:[#allocation10 + $0x14] sm:$0xf]
    %v1116 = vld [vmem:[#allocation10 + $0x18] sm:$0xf]
    %v1117 = vld [vmem:[#allocation10 + $0x1c] sm:$0xf]
    %v1118 = vld [vmem:[#allocation10 + $0x20] sm:$0xf]
    %v1119 = vld [vmem:[#allocation10 + $0x24] sm:$0xf]
    %v1120 = vld [vmem:[#allocation10 + $0x28] sm:$0xf]
    %v1121 = vld [vmem:[#allocation10 + $0x2c] sm:$0xf]
    %v1122 = vld [vmem:[#allocation10 + $0x30] sm:$0xf]
    %v1123 = vld [vmem:[#allocation10 + $0x34] sm:$0xf]
    %v1124 = vld [vmem:[#allocation10 + $0x38] sm:$0xf]
    %v1125 = vld [vmem:[#allocation10 + $0x3c] sm:$0xf]
    %v1126 = vlaneseq
    %v1127 = vshrl.u32 %v1126, 7
    %v1128 = vsub.s32 3, %v1127
    %v1129 = vrot.slane %v103, %v1128
    %v1146 = vunpack.c.l.b16 %v1110
    %v1147 = vunpack.c.l.b16 %v1111
    %v1148 = vunpack.c.l.b16 %v1112
    %v1149 = vunpack.c.l.b16 %v1113
    %v1150 = vunpack.c.l.b16 %v1114
    %v1151 = vunpack.c.l.b16 %v1115
    %v1152 = vunpack.c.l.b16 %v1116
    %v1153 = vunpack.c.l.b16 %v1117
    %v1154 = vunpack.c.l.b16 %v1118
    %v1155 = vunpack.c.l.b16 %v1119
    %v1156 = vunpack.c.l.b16 %v1120
    %v1157 = vunpack.c.l.b16 %v1121
    %v1158 = vunpack.c.l.b16 %v1122
    %v1159 = vunpack.c.l.b16 %v1123
    %v1160 = vunpack.c.l.b16 %v1124
    %v1161 = vunpack.c.l.b16 %v1125
    %v1162 = vpack.c.b16 %v1147, %v1146
    %v1163 = vpack.c.b16 %v1149, %v1148
    %v1164 = vpack.c.b16 %v1151, %v1150
    %v1165 = vpack.c.b16 %v1153, %v1152
    %v1166 = vpack.c.b16 %v1155, %v1154
    %v1167 = vpack.c.b16 %v1157, %v1156
    %v1168 = vpack.c.b16 %v1159, %v1158
    %v1169 = vpack.c.b16 %v1161, %v1160
    %1178 = vmatprep.subr.bf16.mxu0 0
    %1179 = vmatpush1.bf16.msra.mxu0 %v1169
    %1180 = vmatprep.subr.bf16.mxu0 0
    %1181 = vmatpush1.bf16.msra.mxu0 %v1168
    %1182 = vmatprep.subr.bf16.mxu0 0
    %1183 = vmatpush1.bf16.msra.mxu0 %v1167
    %1184 = vmatprep.subr.bf16.mxu0 0
    %1185 = vmatpush1.bf16.msra.mxu0 %v1166
    %1186 = vmatprep.subr.bf16.mxu0 0
    %1187 = vmatpush1.bf16.msra.mxu0 %v1165
    %1188 = vmatprep.subr.bf16.mxu0 0
    %1189 = vmatpush1.bf16.msra.mxu0 %v1164
    %1190 = vmatprep.subr.bf16.mxu0 0
    %1191 = vmatpush1.bf16.msra.mxu0 %v1163
    %1192 = vmatprep.subr.bf16.mxu0 0
    %1193 = vmatpush1.bf16.msra.mxu0 %v1162
    %1194 = vmatprep.subr.bf16.mxu0 0
    %1195 = vmatpush2.bf16.msra.mxu0 0
    %1196 = vmatprep.subr.bf16.mxu0 0
    %1197 = vmatpush2.bf16.msra.mxu0 0
    %1198 = vmatprep.subr.bf16.mxu0 0
    %1199 = vmatpush2.bf16.msra.mxu0 0
    %1200 = vmatprep.subr.bf16.mxu0 0
    %1201 = vmatpush2.bf16.msra.mxu0 0
    %1202 = vmatprep.subr.bf16.mxu0 0
    %1203 = vmatpush2.bf16.msra.mxu0 0
    %1204 = vmatprep.subr.bf16.mxu0 0
    %1205 = vmatpush2.bf16.msra.mxu0 0
    %1206 = vmatprep.subr.bf16.mxu0 0
    %1207 = vmatpush2.bf16.msra.mxu0 0
    %1208 = vmatprep.subr.bf16.mxu0 0
    %1209 = vmatpush2.bf16.msra.mxu0 0
    %1210 = vmatprep.mubr.bf16.mxu0 0
    %1211 = vmatmul.mubr.bf16.gmra.mxu0 %v1109
    %v1212 = vpop.f32.mrf.mxu0
    %v1213 = vadd.f32 %v1129, %v1212
    %v1214 = vpop.f32.mrf.mxu0
    %v1215 = vpop.f32.mrf.mxu0
    %v1216 = vpop.f32.mrf.mxu0
    %1217 = vdwg.mxu0
    %v1218 = vpack.c.bf16 %v1213, %v1213
    %1219 = vst [vmem:[#allocation11] sm:$0xf] %v1218
    // Predicated region
    $region46: #{tpu_custom_call.1} parent=1 // pred_check
      _
    $region47: #{tpu_custom_call.1} parent=1 // pred_check_branch
      %1221 = sbr.rel (0) target = $region49
    $region48: #{tpu_custom_call.1} parent=1 // pred_region
      %s1223 = ssub.s32 64, 64
      %1224 = vsyncadd [#allocation4], %s1223
      %s1226 = sshll.u32 [#allocation11], 4
      %s1227 = int_to_ptr.vmem [resolvable:$true] %s1226
      %1229 = dma.vmem_to_hbm [thread:$0]  %s1227, 64, %s6, [#allocation4]
    $region49: #{tpu_custom_call.1} parent=1 // pred_fallthru
      _
    // Predicated region
    $region50: #{tpu_custom_call.1} parent=1 // pred_check
      _
    $region51: #{tpu_custom_call.1} parent=1 // pred_check_branch
      %1231 = sbr.rel (0) target = $region53
    $region52: #{tpu_custom_call.1} parent=1 // pred_region
      %1232 = dma.done [#allocation4], 64
    $region53: #{tpu_custom_call.1} parent=1 // pred_fallthru
      _
    %1233 = vsyncpa [#allocation3], 1
    %1234 = vsyncpa [#allocation6], 1
    %1235 = vsyncpa [#allocation9], 1
    %1236 = vsyncpa [#allocation4], 1

</llo_original>
